<compile_context>
chip_gen: v6e
topology: v6e:2x2x1
jax: 0.10.0
libtpu: 0.0.40
codegen_flags: <defaults>
</compile_context>

<pallas_src>
import functools

import jax
import jax.numpy as jnp
from jax.experimental import pallas as pl
from jax.experimental.pallas import tpu as pltpu


def _round_up(a, b):
    return (a + b - 1) // b * b


# ---------------------------------------------------------------------------
# Fused kernel: conv-as-matmul + batch-stat accumulation (phase 0),
#               BN (batch statistics) + ReLU writeback (phase 1)
# ---------------------------------------------------------------------------
def _encoder_kernel(xcolT_ref, wcol_ref, gamma_ref, beta_ref, out_ref,
                    sum_sc, ssq_sc, scale_sc, shift_sc, *, m_true, eps):
    p = pl.program_id(0)   # phase: 0 = statistics, 1 = normalized writeback
    i = pl.program_id(1)   # M tile index

    # Conv tile as matmul: (C_out, K) @ (K, tm) -> (C_out, tm); tm is lane-dense.
    y = jnp.dot(wcol_ref[...], xcolT_ref[...],
                preferred_element_type=jnp.float32)

    @pl.when(jnp.logical_and(p == 0, i == 0))
    def _():
        sum_sc[...] = jnp.zeros_like(sum_sc)
        ssq_sc[...] = jnp.zeros_like(ssq_sc)

    @pl.when(p == 0)
    def _():
        # Per-channel partial sums over the lane (M) axis.
        sum_sc[...] += jnp.sum(y, axis=1, keepdims=True)
        ssq_sc[...] += jnp.sum(y * y, axis=1, keepdims=True)

    @pl.when(jnp.logical_and(p == 1, i == 0))
    def _():
        # Hoisted BN scale/shift: computed once, reused for every phase-1 tile.
        mean = sum_sc[...] / m_true                       # (C_out, 1)
        var = ssq_sc[...] / m_true - mean * mean          # biased variance
        inv_std = jax.lax.rsqrt(var + eps)
        scale = gamma_ref[...] * inv_std
        scale_sc[...] = scale
        shift_sc[...] = beta_ref[...] - mean * scale

    @pl.when(p == 1)
    def _():
        out_ref[...] = jnp.maximum(
            y * scale_sc[...] + shift_sc[...], 0.0).astype(out_ref.dtype)


# ---------------------------------------------------------------------------
# Glue: im2col in (K, M) orientation (plain JAX)
# ---------------------------------------------------------------------------
def _im2col_T(x, kh, kw, sh, sw, ph, pw):
    n, c, h, w = x.shape
    xp = jnp.pad(x, ((0, 0), (0, 0), (ph, ph), (pw, pw)))
    ho = (h + 2 * ph - kh) // sh + 1
    wo = (w + 2 * pw - kw) // sw + 1
    patches = []
    for i in range(kh):
        for j in range(kw):
            patches.append(xp[:, :, i:i + sh * ho:sh, j:j + sw * wo:sw])
    cols = jnp.stack(patches, axis=2)                    # (N, C, KH*KW, Ho, Wo)
    k_dim = c * kh * kw
    cols = cols.reshape(n, k_dim, ho, wo)                # K-order = (c, kh, kw)
    xcolT = cols.transpose(1, 0, 2, 3).reshape(k_dim, n * ho * wo)  # (K, M)
    return xcolT, ho, wo


def _choose_tm(m, k_dim, c_out, vmem_budget_bytes=16 * 1024 * 1024):
    """Lane-dense M tile: multiple of 128, <=512, capped against a VMEM budget
    (double-buffered (K,tm) input block + (C_out,tm) output block, f32)."""
    tm = min(512, _round_up(m, 128))
    while tm > 128 and 2 * 4 * tm * (k_dim + c_out) > vmem_budget_bytes:
        tm -= 128
    return tm


# ---------------------------------------------------------------------------
# Public wrapper: full Encoder forward pass
# ---------------------------------------------------------------------------
def encoder_forward(x, weight, bias, gamma, beta, *, stride, padding, eps=1e-5):
    """x: (N, C_in, H, W) NCHW.  weight: (C_out, C_in, KH, KW) OIHW.

    `bias` is accepted for API parity with nn.Conv2d but is intentionally not
    applied: a per-channel constant shift cancels exactly under training-mode
    BatchNorm, so the forward output is identical.
    """
    del bias  # cancels under training-mode BatchNorm (exact)

    n, c_in, h, w = x.shape
    c_out, _, kh, kw = weight.shape
    sh, sw = stride
    ph, pw = padding

    xcolT, ho, wo = _im2col_T(x, kh, kw, sh, sw, ph, pw)     # (K, M)
    k_dim, m = xcolT.shape

    tm = _choose_tm(m, k_dim, c_out)
    m_pad = _round_up(m, tm)
    if m_pad != m:
        # Zero columns -> exactly-zero conv outputs (no bias) -> stats exact.
        xcolT = jnp.pad(xcolT, ((0, 0), (0, m_pad - m)))
    nt = m_pad // tm

    wcol = weight.reshape(c_out, k_dim).astype(jnp.float32)   # (C_out, K)
    gamma2 = gamma.reshape(c_out, 1).astype(jnp.float32)
    beta2 = beta.reshape(c_out, 1).astype(jnp.float32)

    out = pl.pallas_call(
        functools.partial(_encoder_kernel, m_true=float(m), eps=float(eps)),
        out_shape=jax.ShapeDtypeStruct((c_out, m_pad), jnp.float32),
        grid_spec=pltpu.PrefetchScalarGridSpec(
            num_scalar_prefetch=0,
            grid=(2, nt),                                  # (phase, M tile)
            in_specs=[
                pl.BlockSpec((k_dim, tm), lambda p, i: (0, i)),
                pl.BlockSpec((c_out, k_dim), lambda p, i: (0, 0)),
                pl.BlockSpec((c_out, 1), lambda p, i: (0, 0)),
                pl.BlockSpec((c_out, 1), lambda p, i: (0, 0)),
            ],
            # Phase 0 pins the output to block (0, 0) (never written, never
            # changes -> no HBM writeback); phase 1 writes each tile once.
            out_specs=pl.BlockSpec((c_out, tm), lambda p, i: (0, i * p)),
            scratch_shapes=[
                pltpu.VMEM((c_out, 1), jnp.float32),   # channel sum
                pltpu.VMEM((c_out, 1), jnp.float32),   # channel sum-of-squares
                pltpu.VMEM((c_out, 1), jnp.float32),   # BN scale (hoisted)
                pltpu.VMEM((c_out, 1), jnp.float32),   # BN shift (hoisted)
            ],
        ),
        compiler_params=pltpu.CompilerParams(
            # Both axes must be sequential: phase 1 consumes phase-0 stats,
            # and stats accumulate across M tiles.
            dimension_semantics=("arbitrary", "arbitrary"),
            vmem_limit_bytes=32 * 1024 * 1024),
    )(xcolT, wcol, gamma2, beta2)

    out = out[:, :m]                                       # strip M padding
    # (C_out, M) -> (C_out, N, Ho, Wo) -> NCHW
    return out.reshape(c_out, n, ho, wo).transpose(1, 0, 2, 3)


# ---------------------------------------------------------------------------
# Pure-JAX reference (sanity check only)
# ---------------------------------------------------------------------------
def _reference(x, weight, bias, gamma, beta, *, stride, padding, eps=1e-5):
    y = jax.lax.conv_general_dilated(
        x, weight, window_strides=stride,
        padding=[(padding[0], padding[0]), (padding[1], padding[1])],
        dimension_numbers=("NCHW", "OIHW", "NCHW"))
    y = y + bias.reshape(1, -1, 1, 1)
    mean = y.mean(axis=(0, 2, 3), keepdims=True)
    var = y.var(axis=(0, 2, 3), keepdims=True)      # biased, like PyTorch BN
    y = (y - mean) * jax.lax.rsqrt(var + eps)
    y = y * gamma.reshape(1, -1, 1, 1) + beta.reshape(1, -1, 1, 1)
    return jnp.maximum(y, 0.0)


if __name__ == "__main__":
    # Module config: Encoder(in_channels=4, out_channels=8, kernel_size=(3,3),
    #                        stride=(2,2))  -> padding defaults to (1,1)
    N, C_IN, H, W = 2, 4, 16, 16
    C_OUT, KH, KW = 8, 3, 3
    STRIDE = (2, 2)
    PADDING = ((KH - 1) // 2, (KW - 1) // 2)

    key = jax.random.PRNGKey(0)
    kx, kw_, kb, kg, kbt = jax.random.split(key, 5)

    x = jax.random.normal(kx, (N, C_IN, H, W), dtype=jnp.float32)
    weight = 0.1 * jax.random.normal(kw_, (C_OUT, C_IN, KH, KW), dtype=jnp.float32)
    bias = 0.1 * jax.random.normal(kb, (C_OUT,), dtype=jnp.float32)
    gamma = 1.0 + 0.1 * jax.random.normal(kg, (C_OUT,), dtype=jnp.float32)
    beta = 0.1 * jax.random.normal(kbt, (C_OUT,), dtype=jnp.float32)

    out = encoder_forward(x, weight, bias, gamma, beta,
                          stride=STRIDE, padding=PADDING)
    out = jax.block_until_ready(out)

    ref = _reference(x, weight, bias, gamma, beta,
                     stride=STRIDE, padding=PADDING)
    assert out.shape == ref.shape, (out.shape, ref.shape)
    max_err = float(jnp.max(jnp.abs(out - ref)))
    assert max_err < 1e-2, f"max abs error too large: {max_err}"

    print("KERNEL_OK")
</pallas_src>

<mosaic_0001>
module attributes {stable_mosaic.version = 11 : i64} {
  func.func @_encoder_kernel(%arg0: i32, %arg1: i32, %arg2: memref<36x128xf32, #tpu.memory_space<vmem>>, %arg3: memref<8x36xf32, #tpu.memory_space<vmem>>, %arg4: memref<8x1xf32, #tpu.memory_space<vmem>>, %arg5: memref<8x1xf32, #tpu.memory_space<vmem>>, %arg6: memref<8x128xf32, #tpu.memory_space<vmem>>, %arg7: memref<8x1xf32, #tpu.memory_space<vmem>>, %arg8: memref<8x1xf32, #tpu.memory_space<vmem>>, %arg9: memref<8x1xf32, #tpu.memory_space<vmem>>, %arg10: memref<8x1xf32, #tpu.memory_space<vmem>>) attributes {dimension_semantics = [#tpu.dimension_semantics<arbitrary>, #tpu.dimension_semantics<arbitrary>], iteration_bounds = array<i64: 2, 1>, scalar_prefetch = 0 : i64, scratch_operands = 4 : i64, tpu.core_type = #tpu.core_type<tc>, window_params = [{transform_indices = @transform_0, window_bounds = array<i64: 36, 128>}, {pipeline_mode = #tpu.pipeline_mode<synchronous>, transform_indices = @transform_1, window_bounds = array<i64: 8, 36>}, {pipeline_mode = #tpu.pipeline_mode<synchronous>, transform_indices = @transform_2, window_bounds = array<i64: 8, 1>}, {pipeline_mode = #tpu.pipeline_mode<synchronous>, transform_indices = @transform_3, window_bounds = array<i64: 8, 1>}, {transform_indices = @transform_4, window_bounds = array<i64: 8, 128>}]} {
    %c0 = arith.constant 0 : index
    %c0_0 = arith.constant 0 : index
    %0 = vector.load %arg3[%c0, %c0_0] : memref<8x36xf32, #tpu.memory_space<vmem>>, vector<8x36xf32>
    %c0_1 = arith.constant 0 : index
    %c0_2 = arith.constant 0 : index
    %1 = vector.load %arg2[%c0_1, %c0_2] : memref<36x128xf32, #tpu.memory_space<vmem>>, vector<36x128xf32>
    %cst = arith.constant dense<0.000000e+00> : vector<8x128xf32>
    %2 = tpu.matmul %0, %1, %cst {dimension_numbers = #tpu.dot_dimension_numbers<[1], [0], [0], [1], [0, 0, 1, 1], [], []>} : vector<8x36xf32>, vector<36x128xf32>, vector<8x128xf32> -> vector<8x128xf32>
    %c0_i32 = arith.constant 0 : i32
    %3 = arith.cmpi eq, %arg0, %c0_i32 : i32
    %c0_i32_3 = arith.constant 0 : i32
    %4 = arith.cmpi eq, %arg1, %c0_i32_3 : i32
    %5 = arith.andi %3, %4 : i1
    %6 = arith.extui %5 : i1 to i32
    %c0_i32_4 = arith.constant 0 : i32
    %7 = arith.cmpi ne, %6, %c0_i32_4 : i32
    scf.if %7 {
      %cst_11 = arith.constant 0.000000e+00 : f32
      %19 = vector.broadcast %cst_11 : f32 to vector<8x1xf32>
      %c0_12 = arith.constant 0 : index
      %c0_13 = arith.constant 0 : index
      %20 = vector.load %arg7[%c0_12, %c0_13] : memref<8x1xf32, #tpu.memory_space<vmem>>, vector<8x1xf32>
      tpu.vector_store %arg7[%c0_12, %c0_13], %19 {strides = array<i32>} : memref<8x1xf32, #tpu.memory_space<vmem>>, vector<8x1xf32>,
      %cst_14 = arith.constant 0.000000e+00 : f32
      %21 = vector.broadcast %cst_14 : f32 to vector<8x1xf32>
      %c0_15 = arith.constant 0 : index
      %c0_16 = arith.constant 0 : index
      %22 = vector.load %arg8[%c0_15, %c0_16] : memref<8x1xf32, #tpu.memory_space<vmem>>, vector<8x1xf32>
      tpu.vector_store %arg8[%c0_15, %c0_16], %21 {strides = array<i32>} : memref<8x1xf32, #tpu.memory_space<vmem>>, vector<8x1xf32>,
    } else {
    }
    %c0_i32_5 = arith.constant 0 : i32
    %8 = arith.cmpi eq, %arg0, %c0_i32_5 : i32
    %9 = arith.extui %8 : i1 to i32
    %c0_i32_6 = arith.constant 0 : i32
    %10 = arith.cmpi ne, %9, %c0_i32_6 : i32
    scf.if %10 {
      %c0_11 = arith.constant 0 : index
      %c0_12 = arith.constant 0 : index
      %19 = vector.load %arg7[%c0_11, %c0_12] : memref<8x1xf32, #tpu.memory_space<vmem>>, vector<8x1xf32>
      %cst_13 = arith.constant dense<0.000000e+00> : vector<8xf32>
      %20 = vector.multi_reduction <add>, %2, %cst_13 [1] : vector<8x128xf32> to vector<8xf32>
      %21 = vector.shape_cast %20 : vector<8xf32> to vector<8x1xf32>
      %22 = arith.addf %19, %21 : vector<8x1xf32>
      %c0_14 = arith.constant 0 : index
      %c0_15 = arith.constant 0 : index
      %23 = vector.load %arg7[%c0_14, %c0_15] : memref<8x1xf32, #tpu.memory_space<vmem>>, vector<8x1xf32>
      tpu.vector_store %arg7[%c0_14, %c0_15], %22 {strides = array<i32>} : memref<8x1xf32, #tpu.memory_space<vmem>>, vector<8x1xf32>,
      %c0_16 = arith.constant 0 : index
      %c0_17 = arith.constant 0 : index
      %24 = vector.load %arg8[%c0_16, %c0_17] : memref<8x1xf32, #tpu.memory_space<vmem>>, vector<8x1xf32>
      %25 = arith.mulf %2, %2 : vector<8x128xf32>
      %cst_18 = arith.constant dense<0.000000e+00> : vector<8xf32>
      %26 = vector.multi_reduction <add>, %25, %cst_18 [1] : vector<8x128xf32> to vector<8xf32>
      %27 = vector.shape_cast %26 : vector<8xf32> to vector<8x1xf32>
      %28 = arith.addf %24, %27 : vector<8x1xf32>
      %c0_19 = arith.constant 0 : index
      %c0_20 = arith.constant 0 : index
      %29 = vector.load %arg8[%c0_19, %c0_20] : memref<8x1xf32, #tpu.memory_space<vmem>>, vector<8x1xf32>
      tpu.vector_store %arg8[%c0_19, %c0_20], %28 {strides = array<i32>} : memref<8x1xf32, #tpu.memory_space<vmem>>, vector<8x1xf32>,
    } else {
    }
    %c1_i32 = arith.constant 1 : i32
    %11 = arith.cmpi eq, %arg0, %c1_i32 : i32
    %c0_i32_7 = arith.constant 0 : i32
    %12 = arith.cmpi eq, %arg1, %c0_i32_7 : i32
    %13 = arith.andi %11, %12 : i1
    %14 = arith.extui %13 : i1 to i32
    %c0_i32_8 = arith.constant 0 : i32
    %15 = arith.cmpi ne, %14, %c0_i32_8 : i32
    scf.if %15 {
      %c0_11 = arith.constant 0 : index
      %c0_12 = arith.constant 0 : index
      %19 = vector.load %arg7[%c0_11, %c0_12] : memref<8x1xf32, #tpu.memory_space<vmem>>, vector<8x1xf32>
      %cst_13 = arith.constant 1.280000e+02 : f32
      %20 = vector.broadcast %cst_13 : f32 to vector<8x1xf32>
      %21 = arith.divf %19, %20 : vector<8x1xf32>
      %c0_14 = arith.constant 0 : index
      %c0_15 = arith.constant 0 : index
      %22 = vector.load %arg8[%c0_14, %c0_15] : memref<8x1xf32, #tpu.memory_space<vmem>>, vector<8x1xf32>
      %cst_16 = arith.constant 1.280000e+02 : f32
      %23 = vector.broadcast %cst_16 : f32 to vector<8x1xf32>
      %24 = arith.divf %22, %23 : vector<8x1xf32>
      %25 = arith.mulf %21, %21 : vector<8x1xf32>
      %26 = arith.subf %24, %25 : vector<8x1xf32>
      %cst_17 = arith.constant 9.99999974E-6 : f32
      %27 = vector.broadcast %cst_17 : f32 to vector<8x1xf32>
      %28 = arith.addf %26, %27 : vector<8x1xf32>
      %29 = math.rsqrt %28 : vector<8x1xf32>
      %c0_18 = arith.constant 0 : index
      %c0_19 = arith.constant 0 : index
      %30 = vector.load %arg4[%c0_18, %c0_19] : memref<8x1xf32, #tpu.memory_space<vmem>>, vector<8x1xf32>
      %31 = arith.mulf %30, %29 : vector<8x1xf32>
      %c0_20 = arith.constant 0 : index
      %c0_21 = arith.constant 0 : index
      %32 = vector.load %arg9[%c0_20, %c0_21] : memref<8x1xf32, #tpu.memory_space<vmem>>, vector<8x1xf32>
      tpu.vector_store %arg9[%c0_20, %c0_21], %31 {strides = array<i32>} : memref<8x1xf32, #tpu.memory_space<vmem>>, vector<8x1xf32>,
      %c0_22 = arith.constant 0 : index
      %c0_23 = arith.constant 0 : index
      %33 = vector.load %arg5[%c0_22, %c0_23] : memref<8x1xf32, #tpu.memory_space<vmem>>, vector<8x1xf32>
      %34 = arith.mulf %21, %31 : vector<8x1xf32>
      %35 = arith.subf %33, %34 : vector<8x1xf32>
      %c0_24 = arith.constant 0 : index
      %c0_25 = arith.constant 0 : index
      %36 = vector.load %arg10[%c0_24, %c0_25] : memref<8x1xf32, #tpu.memory_space<vmem>>, vector<8x1xf32>
      tpu.vector_store %arg10[%c0_24, %c0_25], %35 {strides = array<i32>} : memref<8x1xf32, #tpu.memory_space<vmem>>, vector<8x1xf32>,
    } else {
    }
    %c1_i32_9 = arith.constant 1 : i32
    %16 = arith.cmpi eq, %arg0, %c1_i32_9 : i32
    %17 = arith.extui %16 : i1 to i32
    %c0_i32_10 = arith.constant 0 : i32
    %18 = arith.cmpi ne, %17, %c0_i32_10 : i32
    scf.if %18 {
      %c0_11 = arith.constant 0 : index
      %c0_12 = arith.constant 0 : index
      %19 = vector.load %arg9[%c0_11, %c0_12] : memref<8x1xf32, #tpu.memory_space<vmem>>, vector<8x1xf32>
      %20 = vector.broadcast %19 : vector<8x1xf32> to vector<8x128xf32>
      %21 = arith.mulf %2, %20 : vector<8x128xf32>
      %c0_13 = arith.constant 0 : index
      %c0_14 = arith.constant 0 : index
      %22 = vector.load %arg10[%c0_13, %c0_14] : memref<8x1xf32, #tpu.memory_space<vmem>>, vector<8x1xf32>
      %23 = vector.broadcast %22 : vector<8x1xf32> to vector<8x128xf32>
      %24 = arith.addf %21, %23 : vector<8x128xf32>
      %cst_15 = arith.constant 0.000000e+00 : f32
      %25 = vector.broadcast %cst_15 : f32 to vector<8x128xf32>
      %26 = arith.maximumf %24, %25 : vector<8x128xf32>
      %c0_16 = arith.constant 0 : index
      %c0_17 = arith.constant 0 : index
      %27 = vector.load %arg6[%c0_16, %c0_17] : memref<8x128xf32, #tpu.memory_space<vmem>>, vector<8x128xf32>
      tpu.vector_store %arg6[%c0_16, %c0_17], %26 {strides = array<i32>} : memref<8x128xf32, #tpu.memory_space<vmem>>, vector<8x128xf32>,
    } else {
    }
    return
  }
  func.func @transform_0(%arg0: i32, %arg1: i32) -> (i32, i32) {
    %c0_i32 = arith.constant 0 : i32
    %c0_i32_0 = arith.constant 0 : i32
    return %c0_i32, %arg1 : i32, i32
  }
  func.func @transform_1(%arg0: i32, %arg1: i32) -> (i32, i32) {
    %c0_i32 = arith.constant 0 : i32
    %c0_i32_0 = arith.constant 0 : i32
    %c0_i32_1 = arith.constant 0 : i32
    return %c0_i32, %c0_i32_0 : i32, i32
  }
  func.func @transform_2(%arg0: i32, %arg1: i32) -> (i32, i32) {
    %c0_i32 = arith.constant 0 : i32
    %c0_i32_0 = arith.constant 0 : i32
    %c0_i32_1 = arith.constant 0 : i32
    return %c0_i32, %c0_i32_0 : i32, i32
  }
  func.func @transform_3(%arg0: i32, %arg1: i32) -> (i32, i32) {
    %c0_i32 = arith.constant 0 : i32
    %c0_i32_0 = arith.constant 0 : i32
    %c0_i32_1 = arith.constant 0 : i32
    return %c0_i32, %c0_i32_0 : i32, i32
  }
  func.func @transform_4(%arg0: i32, %arg1: i32) -> (i32, i32) {
    %0 = arith.muli %arg1, %arg0 : i32
    %c0_i32 = arith.constant 0 : i32
    %c0_i32_0 = arith.constant 0 : i32
    return %c0_i32, %0 : i32, i32
  }
}

</mosaic_0001>

<llo_original>
// kernel: tpu_custom_call.1
$region0: #{tpu_custom_call.1}
  #allocation0 [shape = 'u32[]', space=smem, size = 0x4, offset = 0x4, fixed_abs, tag = 'smem constant byte address 0x4 - core index']
  #allocation1 [shape = 'u32[144,128]{1,0:T(1,128)}', space=vmem, size = 0x12000, scoped, tag = 'internal scratch']
  #allocation2 [shape = 'f32[8,1]{1,0:T(8,128)}', space=vmem, size = 0x1000, scoped, tag = 'scratch operand']
  #allocation3 [shape = 'f32[8,1]{1,0:T(8,128)}', space=vmem, size = 0x1000, scoped, tag = 'scratch operand']
  #allocation4 [shape = 'f32[8,1]{1,0:T(8,128)}', space=vmem, size = 0x1000, scoped, tag = 'scratch operand']
  #allocation5 [shape = 'f32[8,1]{1,0:T(8,128)}', space=vmem, size = 0x1000, scoped, tag = 'scratch operand']
  %s0 = inlined_call_operand.hbm [shape: f32[36,128], index: 0, kind: input, shape index: {}]
  %s1 = inlined_call_operand.vmem [shape: f32[8,36], index: 1, kind: input, shape index: {}]
  %s2 = inlined_call_operand.vmem [shape: f32[8,1], index: 2, kind: input, shape index: {}]
  %s3 = inlined_call_operand.vmem [shape: f32[8,1], index: 3, kind: input, shape index: {}]
  %s4 = inlined_call_operand.hbm [shape: f32[8,128], index: 4, kind: output, shape index: {}]
  %s5 = sld [smem:[#allocation0]]
  $region69: #{tpu_custom_call.1} parent=0
    _
  %s7 = ssub.s32 1, %s5
  %s8 = scalar_select 0, %s7, %s5
  $region1: #{tpu_custom_call.1} parent=0
    #allocation6 [shape = 'u8[20480]{0}', space=vmem, size = 0x5000, scoped, tag = 'input window, operand 0, single buffered']
    #allocation7 [shape = 's32[2]{0}', space=sflag, size = 0x8, scoped, tag = 'scoped memory for tpu_custom_call.1']
    #allocation8 [shape = 's32[2]{0}', space=sflag, size = 0x8, scoped, tag = 'scoped memory for tpu_custom_call.1']
    #allocation9 [shape = 'u8[8192]{0}', space=vmem, size = 0x2000, scoped, tag = 'output window, operand 0']
    %9 = vsyncpa [#allocation7], 0
    %10 = vsyncpa [#allocation8], 0
    %s11 = scalar_lea.sflag [#allocation8], 1
    %12 = vsyncpa %s11, 0
    loop: start=0, step=1, limit=4
    $region2: #{tpu_custom_call.1} parent=1 // loop_pre_header
      _
    $region3: #{tpu_custom_call.1} parent=1 // loop_header
      %s14 = sphi 0, %s18
      %p15 = scmp.ge.s32.totalorder %s14, 4
      %s21 = sphi 0, %s33
      %s22 = sphi 0, %s29
      %s23 = sphi 0, %s21
      %s24 = sphi 0, %s22
      %s25 = sphi 0, %s23
      %s26 = sphi 0, %s24
      %s36 = sphi 0, %s38
      %s39 = sphi 0, %s36
      %s40 = sphi 0, %s39
      %s56 = sphi 0, %s40
      %s60 = sphi 0, %s60
      %s62 = sphi 0, %s60
      %s63 = sphi 0, %s62
      %s77 = sphi 0, %s63
      %s81 = sphi 0, %s81
      %s83 = sphi 0, %s81
      %s84 = sphi 0, %s83
      %s98 = sphi 0, %s84
      %s102 = sphi 0, %s102
      %s104 = sphi 0, %s102
      %s105 = sphi 0, %s104
      %s119 = sphi 0, %s105
      %s127 = sphi 0, %s129
      %s130 = sphi 0, %s127
      %s131 = sphi 0, %s130
      %s147 = sphi 0, %s131
    $region4: #{tpu_custom_call.1} parent=1 // loop_header_branch
      %17 = sbr.rel (%p15) target = $region8
    $region5: #{tpu_custom_call.1} parent=1 // loop_body
      %s19 = ssub.s32 %s14, 1
      %s20 = ssub.s32 %s14, 2
      %s27 = sadd.s32 1, %s22
      %p28 = scmp.ge.s32.totalorder %s27, 1
      %s29 = scalar_select %p28, 0, %s27
      %s30 = sadd.s32 1, %s21
      %s31 = scalar_select %p28, %s30, %s21
      %p32 = scmp.ge.s32.totalorder %s31, 2
      %s33 = scalar_select %p32, 0, %s31
      %s34 = ssub.s32 %s22, %s29
      %p35 = scmp.eq.s32.totalorder %s34, 0
      %s37 = sadd.s32 %s36, 1
      %s38 = scalar_select %p35, %s36, %s37
      %p41 = pneg %p35
      %p42 = scmp.eq.s32.totalorder %s14, 1
      %p43 = por %p41, %p42
      %p44 = scmp.ne.s32.totalorder %s36, %s39
      %p45 = scmp.eq.s32.totalorder %s14, 0
      %p46 = por %p44, %p45
      %p47 = scmp.ne.s32.totalorder %s36, %s39
      %p48 = scmp.eq.s32.totalorder %s19, 1
      %p49 = por %p47, %p48
      %p50 = scmp.ne.s32.totalorder %s39, %s40
      %p51 = scmp.eq.s32.totalorder %s19, 0
      %p52 = por %p50, %p51
      %p53 = scmp.ne.s32.totalorder %s39, %s40
      %p54 = scmp.eq.s32.totalorder %s20, 1
      %p55 = por %p53, %p54
      %p57 = scmp.ne.s32.totalorder %s40, %s56
      %p58 = scmp.eq.s32.totalorder %s20, 0
      %p59 = por %p57, %p58
      %s61 = sadd.s32 %s60, 1
      %p64 = scmp.eq.s32.totalorder %s14, 1
      %p65 = scmp.ne.s32.totalorder %s60, %s62
      %p66 = scmp.eq.s32.totalorder %s14, 0
      %p67 = por %p65, %p66
      %p68 = scmp.ne.s32.totalorder %s60, %s62
      %p69 = scmp.eq.s32.totalorder %s19, 1
      %p70 = por %p68, %p69
      %p71 = scmp.ne.s32.totalorder %s62, %s63
      %p72 = scmp.eq.s32.totalorder %s19, 0
      %p73 = por %p71, %p72
      %p74 = scmp.ne.s32.totalorder %s62, %s63
      %p75 = scmp.eq.s32.totalorder %s20, 1
      %p76 = por %p74, %p75
      %p78 = scmp.ne.s32.totalorder %s63, %s77
      %p79 = scmp.eq.s32.totalorder %s20, 0
      %p80 = por %p78, %p79
      %s82 = sadd.s32 %s81, 1
      %p85 = scmp.eq.s32.totalorder %s14, 1
      %p86 = scmp.ne.s32.totalorder %s81, %s83
      %p87 = scmp.eq.s32.totalorder %s14, 0
      %p88 = por %p86, %p87
      %p89 = scmp.ne.s32.totalorder %s81, %s83
      %p90 = scmp.eq.s32.totalorder %s19, 1
      %p91 = por %p89, %p90
      %p92 = scmp.ne.s32.totalorder %s83, %s84
      %p93 = scmp.eq.s32.totalorder %s19, 0
      %p94 = por %p92, %p93
      %p95 = scmp.ne.s32.totalorder %s83, %s84
      %p96 = scmp.eq.s32.totalorder %s20, 1
      %p97 = por %p95, %p96
      %p99 = scmp.ne.s32.totalorder %s84, %s98
      %p100 = scmp.eq.s32.totalorder %s20, 0
      %p101 = por %p99, %p100
      %s103 = sadd.s32 %s102, 1
      %p106 = scmp.eq.s32.totalorder %s14, 1
      %p107 = scmp.ne.s32.totalorder %s102, %s104
      %p108 = scmp.eq.s32.totalorder %s14, 0
      %p109 = por %p107, %p108
      %p110 = scmp.ne.s32.totalorder %s102, %s104
      %p111 = scmp.eq.s32.totalorder %s19, 1
      %p112 = por %p110, %p111
      %p113 = scmp.ne.s32.totalorder %s104, %s105
      %p114 = scmp.eq.s32.totalorder %s19, 0
      %p115 = por %p113, %p114
      %p116 = scmp.ne.s32.totalorder %s104, %s105
      %p117 = scmp.eq.s32.totalorder %s20, 1
      %p118 = por %p116, %p117
      %p120 = scmp.ne.s32.totalorder %s105, %s119
      %p121 = scmp.eq.s32.totalorder %s20, 0
      %p122 = por %p120, %p121
      %s123 = smul.u32 %s22, %s21
      %s124 = smul.u32 %s29, %s33
      %s125 = ssub.s32 %s123, %s124
      %p126 = scmp.eq.s32.totalorder %s125, 0
      %s128 = sadd.s32 %s127, 1
      %s129 = scalar_select %p126, %s127, %s128
      %p132 = pneg %p126
      %p133 = scmp.eq.s32.totalorder %s14, 1
      %p134 = por %p132, %p133
      %p135 = scmp.ne.s32.totalorder %s127, %s130
      %p136 = scmp.eq.s32.totalorder %s14, 0
      %p137 = por %p135, %p136
      %p138 = scmp.ne.s32.totalorder %s127, %s130
      %p139 = scmp.eq.s32.totalorder %s19, 1
      %p140 = por %p138, %p139
      %p141 = scmp.ne.s32.totalorder %s130, %s131
      %p142 = scmp.eq.s32.totalorder %s19, 0
      %p143 = por %p141, %p142
      %p144 = scmp.ne.s32.totalorder %s130, %s131
      %p145 = scmp.eq.s32.totalorder %s20, 1
      %p146 = por %p144, %p145
      %p148 = scmp.ne.s32.totalorder %s131, %s147
      %p149 = scmp.eq.s32.totalorder %s20, 0
      %p150 = por %p148, %p149
      %p151 = scmp.le.s32.totalorder 1, %s14
      %p152 = scmp.lt.s32.totalorder %s14, 3
      %p153 = pnand %p151, %p152
      %p154 = pneg %p153
      // Predicated region
      $region9: #{tpu_custom_call.1} parent=5 // pred_check
        _
      $region10: #{tpu_custom_call.1} parent=5 // pred_check_branch
        %156 = sbr.rel (%p153) target = $region12
      $region11: #{tpu_custom_call.1} parent=5 // pred_region
        %s157 = ssub.s32 %s14, 1
        // Predicated region
        $region13: #{tpu_custom_call.1} parent=11 // pred_check
          %p158 = pneg %p52
        $region14: #{tpu_custom_call.1} parent=11 // pred_check_branch
          %160 = sbr.rel (%p158) target = $region16
        $region15: #{tpu_custom_call.1} parent=11 // pred_region
          %s162 = ssub.s32 640, 640
          %163 = vsyncadd [#allocation7], %s162
          %s164 = smul.addr %s24, 128
          %s165 = scalar_lea.hbm %s0, %s164
          %s166 = sshll.u32 [#allocation6], 4
          %s167 = int_to_ptr.vmem [resolvable:$true] %s166
          %172 = dma.hbm_to_vmem [thread:$0]  %s165, 640, %s167, [#allocation7], 128, 128, 8
        $region16: #{tpu_custom_call.1} parent=11 // pred_fallthru
          _
        // Predicated region
        $region17: #{tpu_custom_call.1} parent=11 // pred_check
          %p173 = pneg %p73
        $region18: #{tpu_custom_call.1} parent=11 // pred_check_branch
          %175 = sbr.rel (%p173) target = $region20
        $region19: #{tpu_custom_call.1} parent=11 // pred_region
          _
        $region20: #{tpu_custom_call.1} parent=11 // pred_fallthru
          _
        // Predicated region
        $region21: #{tpu_custom_call.1} parent=11 // pred_check
          %p176 = pneg %p94
        $region22: #{tpu_custom_call.1} parent=11 // pred_check_branch
          %178 = sbr.rel (%p176) target = $region24
        $region23: #{tpu_custom_call.1} parent=11 // pred_region
          _
        $region24: #{tpu_custom_call.1} parent=11 // pred_fallthru
          _
        // Predicated region
        $region25: #{tpu_custom_call.1} parent=11 // pred_check
          %p179 = pneg %p115
        $region26: #{tpu_custom_call.1} parent=11 // pred_check_branch
          %181 = sbr.rel (%p179) target = $region28
        $region27: #{tpu_custom_call.1} parent=11 // pred_region
          _
        $region28: #{tpu_custom_call.1} parent=11 // pred_fallthru
          _
      $region12: #{tpu_custom_call.1} parent=5 // pred_fallthru
        _
      %p182 = scmp.lt.s32.totalorder %s14, 2
      // Predicated region
      $region29: #{tpu_custom_call.1} parent=5 // pred_check
        %p183 = pneg %p182
      $region30: #{tpu_custom_call.1} parent=5 // pred_check_branch
        %185 = sbr.rel (%p183) target = $region32
      $region31: #{tpu_custom_call.1} parent=5 // pred_region
        _
      $region32: #{tpu_custom_call.1} parent=5 // pred_fallthru
        _
      %p186 = scmp.le.s32.totalorder 1, %s14
      %p187 = scmp.lt.s32.totalorder %s14, 3
      %p188 = pnand %p186, %p187
      %p189 = pneg %p188
      // Predicated region
      $region33: #{tpu_custom_call.1} parent=5 // pred_check
        _
      $region34: #{tpu_custom_call.1} parent=5 // pred_check_branch
        %191 = sbr.rel (%p188) target = $region36
      $region35: #{tpu_custom_call.1} parent=5 // pred_region
        %s192 = ssub.s32 %s14, 1
        // Predicated region
        $region37: #{tpu_custom_call.1} parent=35 // pred_check
          %p193 = pneg %p52
        $region38: #{tpu_custom_call.1} parent=35 // pred_check_branch
          %195 = sbr.rel (%p193) target = $region40
        $region39: #{tpu_custom_call.1} parent=35 // pred_region
          %196 = dma.done [#allocation7], 640
        $region40: #{tpu_custom_call.1} parent=35 // pred_fallthru
          _
        %p197 = pneg %p52
        %p198 = pneg %p49
        %p199 = pneg %p73
        %p200 = pneg %p70
        %p201 = pneg %p94
        %p202 = pneg %p91
        %p203 = pneg %p115
        %p204 = pneg %p112
        %p205 = pneg %p143
        %p206 = pneg %p140
        %s207 = sand.u32 %s130, 1
        %s208 = scalar_lea.sflag [#allocation8], %s207
        %s209 = sand.u32 %s130, 1
        %s210 = smul.addr %s209, 8
        %s211 = scalar_lea.vmem [#allocation9], %s210
        %s212 = smul.u32 %s24, %s23
        %v213 = vld [vmem:[%s1] sm:$0xff]
        %v214 = vld [vmem:[#allocation6] sm:$0xff]
        %v215 = vld [vmem:[#allocation6 + $0x8] sm:$0xff]
        %v216 = vld [vmem:[#allocation6 + $0x10] sm:$0xff]
        %v217 = vld [vmem:[#allocation6 + $0x18] sm:$0xff]
        %v218 = vld [vmem:[#allocation6 + $0x20] sm:$0xf]
        %vm219 = vcmask 293888
        %v221 = vsel %vm219, %v213, 0
        %vm223 = vcmask 1043456
        %v225 = vsel %vm223, %v218, 0
        %227 = vmatprep.subr.mxu0 0.0
        %228 = vmatpush1.msra.mxu0 0.0
        %229 = vmatprep.subr.mxu0 0.0
        %230 = vmatpush1.msra.mxu0 0.0
        %231 = vmatprep.subr.mxu0 0.0
        %232 = vmatpush1.msra.mxu0 0.0
        %233 = vmatprep.subr.mxu0 0.0
        %234 = vmatpush1.msra.mxu0 0.0
        %235 = vmatprep.subr.mxu0 0.0
        %236 = vmatpush1.msra.mxu0 0.0
        %237 = vmatprep.subr.mxu0 0.0
        %238 = vmatpush1.msra.mxu0 0.0
        %239 = vmatprep.subr.mxu0 0.0
        %240 = vmatpush1.msra.mxu0 0.0
        %241 = vmatprep.subr.mxu0 0.0
        %242 = vmatpush1.msra.mxu0 0.0
        %243 = vmatprep.subr.mxu0 0.0
        %244 = vmatpush1.msra.mxu0 0.0
        %245 = vmatprep.subr.mxu0 0.0
        %246 = vmatpush1.msra.mxu0 0.0
        %247 = vmatprep.subr.mxu0 0.0
        %248 = vmatpush1.msra.mxu0 0.0
        %249 = vmatprep.subr.mxu0 0.0
        %250 = vmatpush1.msra.mxu0 %v225
        %251 = vmatprep.subr.mxu0 0.0
        %252 = vmatpush1.msra.mxu0 %v217
        %253 = vmatprep.subr.mxu0 0.0
        %254 = vmatpush1.msra.mxu0 %v216
        %255 = vmatprep.subr.mxu0 0.0
        %256 = vmatpush1.msra.mxu0 %v215
        %257 = vmatprep.subr.mxu0 0.0
        %258 = vmatpush1.msra.mxu0 %v214
        %259 = vmatprep.subr.mxu0 0.0
        %260 = vmatpush2.msra.mxu0 0.0
        %261 = vmatprep.subr.mxu0 0.0
        %262 = vmatpush2.msra.mxu0 0.0
        %263 = vmatprep.subr.mxu0 0.0
        %264 = vmatpush2.msra.mxu0 0.0
        %265 = vmatprep.subr.mxu0 0.0
        %266 = vmatpush2.msra.mxu0 0.0
        %267 = vmatprep.subr.mxu0 0.0
        %268 = vmatpush2.msra.mxu0 0.0
        %269 = vmatprep.subr.mxu0 0.0
        %270 = vmatpush2.msra.mxu0 0.0
        %271 = vmatprep.subr.mxu0 0.0
        %272 = vmatpush2.msra.mxu0 0.0
        %273 = vmatprep.subr.mxu0 0.0
        %274 = vmatpush2.msra.mxu0 0.0
        %275 = vmatprep.subr.mxu0 0.0
        %276 = vmatpush2.msra.mxu0 0.0
        %277 = vmatprep.subr.mxu0 0.0
        %278 = vmatpush2.msra.mxu0 0.0
        %279 = vmatprep.subr.mxu0 0.0
        %280 = vmatpush2.msra.mxu0 0.0
        %281 = vmatprep.subr.mxu0 0.0
        %282 = vmatpush2.msra.mxu0 0.0
        %283 = vmatprep.subr.mxu0 0.0
        %284 = vmatpush2.msra.mxu0 0.0
        %285 = vmatprep.subr.mxu0 0.0
        %286 = vmatpush2.msra.mxu0 0.0
        %287 = vmatprep.subr.mxu0 0.0
        %288 = vmatpush2.msra.mxu0 0.0
        %289 = vmatprep.subr.mxu0 0.0
        %290 = vmatpush2.msra.mxu0 0.0
        %291 = vmatprep.mubr.f32.mxu0 0.0
        %292 = vmatmul.mubr.f32.gmra.mxu0 %v221
        %v293 = vpop.f32.mrf.mxu0
        %v294 = vadd.f32 0.0, %v293
        %v295 = vpop.f32.mrf.mxu0
        %296 = vdwg.mxu0
        %p297 = scmp.eq.s32.totalorder %s23, 0
        %p298 = scmp.eq.s32.totalorder %s24, 0
        %p299 = pnand %p297, %p298
        %p300 = pneg %p299
        // Predicated region
        $region41: #{tpu_custom_call.1} parent=35 // pred_check
          _
        $region42: #{tpu_custom_call.1} parent=35 // pred_check_branch
          %302 = sbr.rel (%p299) target = $region44
        $region43: #{tpu_custom_call.1} parent=35 // pred_region
          %vm303 = vcmask 7168
          %304 = vst.msk [vmem:[#allocation2] sm:$0xff] %vm303, 0.0
          %305 = vst.msk [vmem:[#allocation3] sm:$0xff] %vm303, 0.0
        $region44: #{tpu_custom_call.1} parent=35 // pred_fallthru
          _
        // Predicated region
        $region45: #{tpu_custom_call.1} parent=35 // pred_check
          %p306 = pneg %p297
        $region46: #{tpu_custom_call.1} parent=35 // pred_check_branch
          %308 = sbr.rel (%p306) target = $region48
        $region47: #{tpu_custom_call.1} parent=35 // pred_region
          %v309 = vld [vmem:[#allocation2] sm:$0xff]
          %310 = vadd.xlane.f32.xlu0 %v294
          %v311 = vpop.xlane.xlu0 %310
          %v312 = vadd.f32 %v309, %v311
          %vm313 = vcmask 7168
          %314 = vst.msk [vmem:[#allocation2] sm:$0xff] %vm313, %v312
          %v315 = vld [vmem:[#allocation3] sm:$0xff]
          %v316 = vmul.f32 %v294, %v294
          %317 = vadd.xlane.f32.xlu0 %v316
          %v318 = vpop.xlane.xlu0 %317
          %v319 = vadd.f32 %v315, %v318
          %320 = vst.msk [vmem:[#allocation3] sm:$0xff] %vm313, %v319
        $region48: #{tpu_custom_call.1} parent=35 // pred_fallthru
          _
        %p321 = scmp.eq.s32.totalorder %s23, 1
        %p322 = pnand %p321, %p298
        %p323 = pneg %p322
        // Predicated region
        $region49: #{tpu_custom_call.1} parent=35 // pred_check
          _
        $region50: #{tpu_custom_call.1} parent=35 // pred_check_branch
          %325 = sbr.rel (%p322) target = $region52
        $region51: #{tpu_custom_call.1} parent=35 // pred_region
          %v326 = vld [vmem:[#allocation2] sm:$0xff]
          %v327 = vrcp.pop 128.0
          %v328 = vmul.f32 %v326, %v327
          %v329 = vld [vmem:[#allocation3] sm:$0xff]
          %v330 = vmul.f32 %v329, %v327
          %v331 = vmul.f32 %v328, %v328
          %v332 = vsub.f32 %v330, %v331
          %v333 = vadd.f32 %v332, 1e-05
          %v334 = vrsqrt.pop %v333
          %v335 = vld [vmem:[%s2] sm:$0xff]
          %v336 = vmul.f32 %v335, %v334
          %vm337 = vcmask 7168
          %338 = vst.msk [vmem:[#allocation4] sm:$0xff] %vm337, %v336
          %v339 = vld [vmem:[%s3] sm:$0xff]
          %v340 = vmul.f32 %v328, %v336
          %v341 = vsub.f32 %v339, %v340
          %342 = vst.msk [vmem:[#allocation5] sm:$0xff] %vm337, %v341
        $region52: #{tpu_custom_call.1} parent=35 // pred_fallthru
          _
        // Predicated region
        $region53: #{tpu_custom_call.1} parent=35 // pred_check
          %p343 = pneg %p321
        $region54: #{tpu_custom_call.1} parent=35 // pred_check_branch
          %345 = sbr.rel (%p343) target = $region56
        $region55: #{tpu_custom_call.1} parent=35 // pred_region
          %v346 = vld [vmem:[#allocation4] sm:$0xff]
          %348 = vset.pattern.permute.xlu0 0
          %349 = vperm.xlu0 %348, %v346
          %v350 = vpop.permute.xlu0 %349
          %v352 = vmul.f32 %v294, %v350
          %v353 = vld [vmem:[#allocation5] sm:$0xff]
          %355 = vset.pattern.permute.xlu0 0
          %356 = vperm.xlu0 %355, %v353
          %v357 = vpop.permute.xlu0 %356
          %v359 = vadd.f32 %v352, %v357
          %v360 = vmax.f32 %v359, 0.0
          %361 = vst [vmem:[%s211] sm:$0xff] %v360
        $region56: #{tpu_custom_call.1} parent=35 // pred_fallthru
          _
        %s362 = sand.u32 %s130, 1
        %s363 = scalar_lea.sflag [#allocation8], %s362
        %s364 = sand.u32 %s130, 1
        %s365 = smul.addr %s364, 8
        %s366 = scalar_lea.vmem [#allocation9], %s365
        // Predicated region
        $region57: #{tpu_custom_call.1} parent=35 // pred_check
          %p367 = pneg %p140
        $region58: #{tpu_custom_call.1} parent=35 // pred_check_branch
          %369 = sbr.rel (%p367) target = $region60
        $region59: #{tpu_custom_call.1} parent=35 // pred_region
          %s370 = smul.u32 %s24, %s23
          %s372 = ssub.s32 128, 128
          %373 = vsyncadd %s363, %s372
          %s374 = smul.addr %s370, 128
          %s375 = scalar_lea.hbm %s4, %s374
          %s377 = sshll.u32 %s366, 4
          %s378 = int_to_ptr.vmem [resolvable:$true] %s377
          %380 = dma.vmem_to_hbm [thread:$0]  %s378, 128, %s375, %s363
        $region60: #{tpu_custom_call.1} parent=35 // pred_fallthru
          _
      $region36: #{tpu_custom_call.1} parent=5 // pred_fallthru
        _
      %p381 = scmp.le.s32.totalorder 2, %s14
      // Predicated region
      $region61: #{tpu_custom_call.1} parent=5 // pred_check
        %p382 = pneg %p381
      $region62: #{tpu_custom_call.1} parent=5 // pred_check_branch
        %384 = sbr.rel (%p382) target = $region64
      $region63: #{tpu_custom_call.1} parent=5 // pred_region
        %s385 = ssub.s32 %s14, 2
        // Predicated region
        $region65: #{tpu_custom_call.1} parent=63 // pred_check
          %p386 = pneg %p146
        $region66: #{tpu_custom_call.1} parent=63 // pred_check_branch
          %388 = sbr.rel (%p386) target = $region68
        $region67: #{tpu_custom_call.1} parent=63 // pred_region
          %s389 = sand.u32 %s131, 1
          %s390 = scalar_lea.sflag [#allocation8], %s389
          %s391 = sand.u32 %s131, 1
          %s392 = smul.addr %s391, 8
          %s393 = scalar_lea.vmem [#allocation9], %s392
          %394 = dma.done %s390, 128
        $region68: #{tpu_custom_call.1} parent=63 // pred_fallthru
          _
      $region64: #{tpu_custom_call.1} parent=5 // pred_fallthru
        _
    $region6: #{tpu_custom_call.1} parent=1 // loop_footer
      %s18 = sadd.s32 1, %s14
    $region7: #{tpu_custom_call.1} parent=1 // loop_footer_branch
      %13 = sbr.rel target = $region3
    $region8: #{tpu_custom_call.1} parent=1 // loop_exit
      _
    %395 = vsyncpa [#allocation7], 1
    %s396 = scalar_lea.sflag [#allocation7], 1
    %397 = vsyncpa %s396, 1
    %398 = vsyncpa [#allocation8], 1
    %s399 = scalar_lea.sflag [#allocation8], 1
    %400 = vsyncpa %s399, 1

</llo_original>
